<compile_context>
chip_gen: v7x
topology: tpu7x:2x2x1
jax: 0.10.0
libtpu: 0.0.40
codegen_flags: <defaults>
</compile_context>

<pallas_src>
import functools

import jax
import jax.numpy as jnp
from jax.experimental import pallas as pl
from jax.experimental.pallas import tpu as pltpu


def _round_up(n: int, m: int) -> int:
    return (n + m - 1) // m * m


@functools.lru_cache(maxsize=None)
def _vmem_cap_bytes() -> int:
    """Generation-aware usable-VMEM budget (leaves ~15% compiler headroom)."""
    try:
        cap = int(pltpu.get_tpu_info().vmem_capacity_bytes)
        return max(32 << 20, int(cap * 0.85))
    except Exception:
        return 64 << 20  # v7x physical VMEM; a safe bound on every generation


# ---------------------------------------------------------------------------
# Kernels
# ---------------------------------------------------------------------------
def _resident_w_kernel(x_ref, w_ref, b_ref, o_ref):
    # x_ref: [tm, Hp]   w_ref: [Hp, Hp] (VMEM-resident, maybe bf16)   b_ref: [1, Hp]
    x = x_ref[...]
    y = jnp.dot(x.astype(w_ref.dtype), w_ref[...],
                preferred_element_type=jnp.float32)
    # Bias + residual in f32; the residual uses the un-rounded x, so there is
    # no double rounding when the MXU operands are bf16.
    y = y + b_ref[...].astype(jnp.float32) + x.astype(jnp.float32)
    o_ref[...] = y.astype(o_ref.dtype)


def _col_tiled_kernel(xl_ref, w_ref, b_ref, xr_ref, o_ref):
    # xl_ref: [tm, Hp] (full-K lhs)   w_ref: [Hp, tn]   b_ref: [1, tn]
    # xr_ref: [tm, tn] (residual slice)   o_ref: [tm, tn]
    y = jnp.dot(xl_ref[...].astype(w_ref.dtype), w_ref[...],
                preferred_element_type=jnp.float32)
    y = y + b_ref[...].astype(jnp.float32) + xr_ref[...].astype(jnp.float32)
    o_ref[...] = y.astype(o_ref.dtype)


# ---------------------------------------------------------------------------
# Parameter preparation (hoisted out of the per-call path)
# ---------------------------------------------------------------------------
def prepare_linear_params(w, b, mxu_dtype=jnp.bfloat16):
    """Pad the Linear parameters to lane width and cast ONCE at creation time."""
    H = w.shape[0]
    assert w.shape == (H, H) and b.shape == (H,)
    Hp = _round_up(H, 128)
    wp = jnp.pad(w, ((0, Hp - H), (0, Hp - H))) if Hp != H else w
    if mxu_dtype is not None:
        wp = wp.astype(mxu_dtype)
    bp = (jnp.pad(b, (0, Hp - H)) if Hp != H else b).astype(jnp.float32)
    return wp, bp.reshape(1, Hp)


# ---------------------------------------------------------------------------
# Fused  out = x @ W + b + x
# ---------------------------------------------------------------------------
@functools.partial(jax.jit, static_argnames=("tm", "tn", "force_col_tiling"))
def residual_add_linear(x, wp, bp, *, tm=None, tn=None, force_col_tiling=False):
    """x: [B, S, H];  wp [Hp, Hp] / bp [1, Hp] from prepare_linear_params()."""
    B, S, H = x.shape
    M = B * S
    Hp = wp.shape[0]
    assert wp.shape == (Hp, Hp) and bp.shape == (1, Hp)
    assert Hp % 128 == 0 and Hp >= H

    xi = jnp.dtype(x.dtype).itemsize
    wi = jnp.dtype(wp.dtype).itemsize
    vmem_cap = _vmem_cap_bytes()
    headroom = 2 << 20

    # Per-row VMEM cost: double-buffered x & out tiles + f32 epilogue intermediates.
    per_row = 2 * Hp * xi + 2 * Hp * xi + 2 * Hp * 4
    w_resident = Hp * Hp * wi + Hp * 4          # Buffered(1) weight + bias
    budget = vmem_cap - headroom - w_resident
    tm_budget = (budget // per_row) // 8 * 8 if budget > 0 else 0

    # Ensure >= 2 grid steps along rows so both v7x TensorCores get work.
    tm_split = _round_up(-(-M // 2), 8) if M > 8 else 8

    use_resident = (not force_col_tiling) and tm_budget >= min(128, _round_up(M, 8))

    x2 = x.reshape(M, H)

    if use_resident:
        # ----------------------- resident-weight path ------------------------
        tm_req = 512 if tm is None else max(8, _round_up(tm, 8))
        tm_a = max(8, min(tm_req, tm_budget, tm_split, _round_up(M, 8)))
        if tm_a >= 256:
            tm_a = tm_a // 256 * 256            # full 256-wide MXU passes
        else:
            tm_a = tm_a // 8 * 8
        Mp = _round_up(M, tm_a)

        pad_free = (Mp == M) and (Hp == H)
        if not pad_free:
            x2 = jnp.pad(x2, ((0, Mp - M), (0, Hp - H)))

        vmem_limit = int(min(vmem_cap,
                             max(w_resident + tm_a * per_row + headroom, 32 << 20)))

        out = pl.pallas_call(
            _resident_w_kernel,
            out_shape=jax.ShapeDtypeStruct((Mp, Hp), x.dtype),
            grid_spec=pl.GridSpec(
                grid=(Mp // tm_a,),
                in_specs=[
                    pl.BlockSpec((tm_a, Hp), lambda i: (i, 0)),     # x row tile
                    pl.BlockSpec((Hp, Hp), lambda i: (0, 0),        # W resident
                                 pipeline_mode=pl.Buffered(1)),
                    pl.BlockSpec((1, Hp), lambda i: (0, 0),         # bias resident
                                 pipeline_mode=pl.Buffered(1)),
                ],
                out_specs=pl.BlockSpec((tm_a, Hp), lambda i: (i, 0)),
            ),
            compiler_params=pltpu.CompilerParams(
                dimension_semantics=("parallel",),
                vmem_limit_bytes=vmem_limit,
            ),
            # Genuinely in-place residual add only when no padded temporary is
            # involved (otherwise the alias would just target a scratch copy).
            input_output_aliases=({0: 0} if pad_free else {}),
        )(x2, wp, bp)

    else:
        # ------------------- column-tiled fallback (large H) -----------------
        # TODO(synk): add a K-axis grid + f32 VMEM accumulator for H so large
        # that even the (tm, Hp) full-K row slab of x overflows VMEM.
        tn_b = 512 if tn is None else max(128, _round_up(tn, 128))
        tn_b = min(tn_b, Hp)
        while Hp % tn_b != 0:
            tn_b -= 128
        tm_req = 256 if tm is None else max(8, _round_up(tm, 8))
        tm_b = max(8, min(tm_req, tm_split, _round_up(M, 8)) // 8 * 8)

        def _need(tm_, tn_):
            return (2 * tm_ * Hp * xi        # x row slab (lhs), double-buffered
                    + 2 * Hp * tn_ * wi      # W column tile, double-buffered
                    + 2 * tn_ * 4            # bias tile
                    + 2 * tm_ * tn_ * xi     # residual tile
                    + 2 * tm_ * tn_ * xi     # out tile
                    + 2 * tm_ * tn_ * 4      # f32 epilogue intermediate
                    + headroom)

        while _need(tm_b, tn_b) > vmem_cap and tn_b > 128:
            tn_b = max(128, (tn_b // 2) // 128 * 128)
            while Hp % tn_b != 0:
                tn_b -= 128
        while _need(tm_b, tn_b) > vmem_cap and tm_b > 8:
            tm_b = max(8, (tm_b // 2) // 8 * 8)

        Mp = _round_up(M, tm_b)
        if (Mp, Hp) != (M, H):
            x2 = jnp.pad(x2, ((0, Mp - M), (0, Hp - H)))

        vmem_limit = int(min(vmem_cap, max(_need(tm_b, tn_b), 32 << 20)))

        out = pl.pallas_call(
            _col_tiled_kernel,
            out_shape=jax.ShapeDtypeStruct((Mp, Hp), x.dtype),
            grid_spec=pl.GridSpec(
                grid=(Mp // tm_b, Hp // tn_b),
                in_specs=[
                    pl.BlockSpec((tm_b, Hp), lambda i, j: (i, 0)),   # lhs rows
                    pl.BlockSpec((Hp, tn_b), lambda i, j: (0, j)),   # W columns
                    pl.BlockSpec((1, tn_b), lambda i, j: (0, j)),    # bias slice
                    pl.BlockSpec((tm_b, tn_b), lambda i, j: (i, j)),  # residual
                ],
                out_specs=pl.BlockSpec((tm_b, tn_b), lambda i, j: (i, j)),
            ),
            compiler_params=pltpu.CompilerParams(
                dimension_semantics=("parallel", "parallel"),
                vmem_limit_bytes=vmem_limit,
            ),
        )(x2, wp, bp, x2)

    return out[:M, :H].reshape(B, S, H)


if __name__ == "__main__":
    key = jax.random.PRNGKey(0)
    kx, kw, kb, kx2 = jax.random.split(key, 4)

    # --- small unaligned case: B=2, S=8, H=32 -------------------------------
    B, S, H = 2, 8, 32
    x = jax.random.normal(kx, (B, S, H), dtype=jnp.float32)
    w = jax.random.normal(kw, (H, H), dtype=jnp.float32) * 0.1
    b = jax.random.normal(kb, (H,), dtype=jnp.float32) * 0.1

    # bf16 MXU path (default), resident-W kernel.
    wp, bp = prepare_linear_params(w, b)                      # bf16 by default
    out = residual_add_linear(x, wp, bp)
    jax.block_until_ready(out)
    xb = x.astype(jnp.bfloat16).astype(jnp.float32)
    wb = w.astype(jnp.bfloat16).astype(jnp.float32)
    ref_bf16 = jnp.einsum("bsh,hk->bsk", xb, wb) + b + x
    assert jnp.allclose(out, ref_bf16, atol=2e-2, rtol=2e-2), "bf16 resident-W mismatch"

    # f32 MXU path (opt-in) — exact check against plain-JAX reference.
    wp32, bp32 = prepare_linear_params(w, b, mxu_dtype=None)
    out32 = residual_add_linear(x, wp32, bp32)
    jax.block_until_ready(out32)
    ref32 = jnp.einsum("bsh,hk->bsk", x, w) + b + x
    assert jnp.allclose(out32, ref32, atol=1e-5, rtol=1e-5), "f32 resident-W mismatch"

    # Column-tiled fallback path (what large-H on v7x would take), forced here.
    out_ct = residual_add_linear(x, wp, bp, force_col_tiling=True)
    jax.block_until_ready(out_ct)
    assert jnp.allclose(out_ct, ref_bf16, atol=2e-2, rtol=2e-2), "col-tiled mismatch"

    # --- aligned case (padding-free, in-place alias engaged): H=128 ---------
    B2, S2, H2 = 2, 64, 128
    xa = jax.random.normal(kx2, (B2, S2, H2), dtype=jnp.float32)
    kw2, kb2 = jax.random.split(kw)
    w2 = jax.random.normal(kw2, (H2, H2), dtype=jnp.float32) * 0.05
    b2 = jax.random.normal(kb2, (H2,), dtype=jnp.float32) * 0.1
    wp2, bp2 = prepare_linear_params(w2, b2)
    out_a = residual_add_linear(xa, wp2, bp2)
    jax.block_until_ready(out_a)
    xab = xa.astype(jnp.bfloat16).astype(jnp.float32)
    w2b = w2.astype(jnp.bfloat16).astype(jnp.float32)
    ref_a = jnp.einsum("bsh,hk->bsk", xab, w2b) + b2 + xa
    assert jnp.allclose(out_a, ref_a, atol=2e-2, rtol=2e-2), "aligned/in-place mismatch"

    print("KERNEL_OK")
</pallas_src>

<mosaic_0001>
module attributes {stable_mosaic.version = 11 : i64} {
  func.func @_resident_w_kernel(%arg0: i32, %arg1: memref<8x128xf32, #tpu.memory_space<vmem>>, %arg2: memref<128x128xbf16, #tpu.memory_space<vmem>>, %arg3: memref<1x128xf32, #tpu.memory_space<vmem>>, %arg4: memref<8x128xf32, #tpu.memory_space<vmem>>) attributes {dimension_semantics = [#tpu.dimension_semantics<parallel>], iteration_bounds = array<i64: 2>, scalar_prefetch = 0 : i64, scratch_operands = 0 : i64, tpu.core_type = #tpu.core_type<tc>, window_params = [{transform_indices = @transform_0, window_bounds = array<i64: 8, 128>}, {pipeline_mode = #tpu.pipeline_mode<synchronous>, transform_indices = @transform_1, window_bounds = array<i64: 128, 128>}, {pipeline_mode = #tpu.pipeline_mode<synchronous>, transform_indices = @transform_2, window_bounds = array<i64: 1, 128>}, {transform_indices = @transform_3, window_bounds = array<i64: 8, 128>}]} {
    %c0 = arith.constant 0 : index
    %c0_0 = arith.constant 0 : index
    %0 = vector.load %arg1[%c0, %c0_0] : memref<8x128xf32, #tpu.memory_space<vmem>>, vector<8x128xf32>
    %1 = arith.truncf %0 : vector<8x128xf32> to vector<8x128xbf16>
    %c0_1 = arith.constant 0 : index
    %c0_2 = arith.constant 0 : index
    %2 = vector.load %arg2[%c0_1, %c0_2] : memref<128x128xbf16, #tpu.memory_space<vmem>>, vector<128x128xbf16>
    %cst = arith.constant dense<0.000000e+00> : vector<8x128xf32>
    %3 = tpu.matmul %1, %2, %cst {dimension_numbers = #tpu.dot_dimension_numbers<[1], [0], [0], [1], [0, 0, 1, 1], [], []>} : vector<8x128xbf16>, vector<128x128xbf16>, vector<8x128xf32> -> vector<8x128xf32>
    %c0_3 = arith.constant 0 : index
    %c0_4 = arith.constant 0 : index
    %4 = vector.load %arg3[%c0_3, %c0_4] : memref<1x128xf32, #tpu.memory_space<vmem>>, vector<1x128xf32>
    %5 = vector.broadcast %4 : vector<1x128xf32> to vector<8x128xf32>
    %6 = arith.addf %3, %5 : vector<8x128xf32>
    %7 = arith.addf %6, %0 : vector<8x128xf32>
    %c0_5 = arith.constant 0 : index
    %c0_6 = arith.constant 0 : index
    %8 = vector.load %arg4[%c0_5, %c0_6] : memref<8x128xf32, #tpu.memory_space<vmem>>, vector<8x128xf32>
    tpu.vector_store %arg4[%c0_5, %c0_6], %7 {strides = array<i32>} : memref<8x128xf32, #tpu.memory_space<vmem>>, vector<8x128xf32>,
    return
  }
  func.func @transform_0(%arg0: i32) -> (i32, i32) {
    %c0_i32 = arith.constant 0 : i32
    %c0_i32_0 = arith.constant 0 : i32
    return %arg0, %c0_i32 : i32, i32
  }
  func.func @transform_1(%arg0: i32) -> (i32, i32) {
    %c0_i32 = arith.constant 0 : i32
    %c0_i32_0 = arith.constant 0 : i32
    %c0_i32_1 = arith.constant 0 : i32
    return %c0_i32, %c0_i32_0 : i32, i32
  }
  func.func @transform_2(%arg0: i32) -> (i32, i32) {
    %c0_i32 = arith.constant 0 : i32
    %c0_i32_0 = arith.constant 0 : i32
    %c0_i32_1 = arith.constant 0 : i32
    return %c0_i32, %c0_i32_0 : i32, i32
  }
  func.func @transform_3(%arg0: i32) -> (i32, i32) {
    %c0_i32 = arith.constant 0 : i32
    %c0_i32_0 = arith.constant 0 : i32
    return %arg0, %c0_i32 : i32, i32
  }
}

</mosaic_0001>

<llo_original>
// kernel: residual_add_linear.1
$region0: #{residual_add_linear.1}
  #allocation0 [shape = 'u32[]', space=smem, size = 0x4, offset = 0x4, fixed_abs, tag = 'smem constant byte address 0x4 - core index']
  #allocation1 [shape = 'u32[144,128]{1,0:T(1,128)}', space=vmem, size = 0x12000, scoped, tag = 'internal scratch']
  %s0 = inlined_call_operand.vmem [shape: f32[16,128], index: 0, kind: input, shape index: {}]
  %s1 = inlined_call_operand.hbm [shape: bf16[128,128], index: 1, kind: input, shape index: {}]
  %s2 = inlined_call_operand.vmem [shape: f32[1,128], index: 2, kind: input, shape index: {}]
  %s3 = inlined_call_operand.vmem [shape: f32[16,128], index: 3, kind: output, shape index: {}]
  %s4 = sld [smem:[#allocation0]]
  $region49: #{residual_add_linear.1} parent=0
    _
  %s6 = ssub.s32 1, %s4
  %s7 = scalar_select 0, %s6, %s4
  $region1: #{residual_add_linear.1} parent=0
    #allocation2 [shape = 'u8[32768]{0}', space=vmem, size = 0x8000, scoped, tag = 'input window, operand 1, single buffered']
    #allocation3 [shape = 's32[2]{0}', space=sflag, size = 0x8, scoped, tag = 'scoped memory for residual_add_linear.1']
    %8 = vsyncpa [#allocation3], 0
    loop: start=0, step=1, limit=4
    $region2: #{residual_add_linear.1} parent=1 // loop_pre_header
      _
    $region3: #{residual_add_linear.1} parent=1 // loop_header
      %s10 = sphi 0, %s14
      %p11 = scmp.ge.s32.totalorder %s10, 4
      %s20 = sphi 0, %s22
      %s23 = sphi 0, %s20
      %s24 = sphi 0, %s23
      %s40 = sphi 0, %s24
      %s44 = sphi 0, %s44
      %s46 = sphi 0, %s44
      %s47 = sphi 0, %s46
      %s61 = sphi 0, %s47
      %s65 = sphi 0, %s65
      %s67 = sphi 0, %s65
      %s68 = sphi 0, %s67
      %s82 = sphi 0, %s68
      %s88 = sphi 0, %s90
      %s91 = sphi 0, %s88
      %s92 = sphi 0, %s91
      %s108 = sphi 0, %s92
    $region4: #{residual_add_linear.1} parent=1 // loop_header_branch
      %13 = sbr.rel (%p11) target = $region8
    $region5: #{residual_add_linear.1} parent=1 // loop_body
      %s15 = ssub.s32 %s10, 1
      %s16 = ssub.s32 %s10, 2
      %s17 = sadd.s32 %s10, 1
      %s18 = ssub.s32 %s10, %s17
      %p19 = scmp.eq.s32.totalorder %s18, 0
      %s21 = sadd.s32 %s20, 1
      %s22 = scalar_select %p19, %s20, %s21
      %p25 = pneg %p19
      %p26 = scmp.eq.s32.totalorder %s10, 1
      %p27 = por %p25, %p26
      %p28 = scmp.ne.s32.totalorder %s20, %s23
      %p29 = scmp.eq.s32.totalorder %s10, 0
      %p30 = por %p28, %p29
      %p31 = scmp.ne.s32.totalorder %s20, %s23
      %p32 = scmp.eq.s32.totalorder %s15, 1
      %p33 = por %p31, %p32
      %p34 = scmp.ne.s32.totalorder %s23, %s24
      %p35 = scmp.eq.s32.totalorder %s15, 0
      %p36 = por %p34, %p35
      %p37 = scmp.ne.s32.totalorder %s23, %s24
      %p38 = scmp.eq.s32.totalorder %s16, 1
      %p39 = por %p37, %p38
      %p41 = scmp.ne.s32.totalorder %s24, %s40
      %p42 = scmp.eq.s32.totalorder %s16, 0
      %p43 = por %p41, %p42
      %s45 = sadd.s32 %s44, 1
      %p48 = scmp.eq.s32.totalorder %s10, 1
      %p49 = scmp.ne.s32.totalorder %s44, %s46
      %p50 = scmp.eq.s32.totalorder %s10, 0
      %p51 = por %p49, %p50
      %p52 = scmp.ne.s32.totalorder %s44, %s46
      %p53 = scmp.eq.s32.totalorder %s15, 1
      %p54 = por %p52, %p53
      %p55 = scmp.ne.s32.totalorder %s46, %s47
      %p56 = scmp.eq.s32.totalorder %s15, 0
      %p57 = por %p55, %p56
      %p58 = scmp.ne.s32.totalorder %s46, %s47
      %p59 = scmp.eq.s32.totalorder %s16, 1
      %p60 = por %p58, %p59
      %p62 = scmp.ne.s32.totalorder %s47, %s61
      %p63 = scmp.eq.s32.totalorder %s16, 0
      %p64 = por %p62, %p63
      %s66 = sadd.s32 %s65, 1
      %p69 = scmp.eq.s32.totalorder %s10, 1
      %p70 = scmp.ne.s32.totalorder %s65, %s67
      %p71 = scmp.eq.s32.totalorder %s10, 0
      %p72 = por %p70, %p71
      %p73 = scmp.ne.s32.totalorder %s65, %s67
      %p74 = scmp.eq.s32.totalorder %s15, 1
      %p75 = por %p73, %p74
      %p76 = scmp.ne.s32.totalorder %s67, %s68
      %p77 = scmp.eq.s32.totalorder %s15, 0
      %p78 = por %p76, %p77
      %p79 = scmp.ne.s32.totalorder %s67, %s68
      %p80 = scmp.eq.s32.totalorder %s16, 1
      %p81 = por %p79, %p80
      %p83 = scmp.ne.s32.totalorder %s68, %s82
      %p84 = scmp.eq.s32.totalorder %s16, 0
      %p85 = por %p83, %p84
      %s86 = ssub.s32 %s10, %s17
      %p87 = scmp.eq.s32.totalorder %s86, 0
      %s89 = sadd.s32 %s88, 1
      %s90 = scalar_select %p87, %s88, %s89
      %p93 = pneg %p87
      %p94 = scmp.eq.s32.totalorder %s10, 1
      %p95 = por %p93, %p94
      %p96 = scmp.ne.s32.totalorder %s88, %s91
      %p97 = scmp.eq.s32.totalorder %s10, 0
      %p98 = por %p96, %p97
      %p99 = scmp.ne.s32.totalorder %s88, %s91
      %p100 = scmp.eq.s32.totalorder %s15, 1
      %p101 = por %p99, %p100
      %p102 = scmp.ne.s32.totalorder %s91, %s92
      %p103 = scmp.eq.s32.totalorder %s15, 0
      %p104 = por %p102, %p103
      %p105 = scmp.ne.s32.totalorder %s91, %s92
      %p106 = scmp.eq.s32.totalorder %s16, 1
      %p107 = por %p105, %p106
      %p109 = scmp.ne.s32.totalorder %s92, %s108
      %p110 = scmp.eq.s32.totalorder %s16, 0
      %p111 = por %p109, %p110
      %p112 = scmp.le.s32.totalorder 1, %s10
      %p113 = scmp.lt.s32.totalorder %s10, 3
      %p114 = pnand %p112, %p113
      %p115 = pneg %p114
      // Predicated region
      $region9: #{residual_add_linear.1} parent=5 // pred_check
        _
      $region10: #{residual_add_linear.1} parent=5 // pred_check_branch
        %117 = sbr.rel (%p114) target = $region12
      $region11: #{residual_add_linear.1} parent=5 // pred_region
        %s118 = ssub.s32 %s10, 1
        // Predicated region
        $region13: #{residual_add_linear.1} parent=11 // pred_check
          %p119 = pneg %p57
        $region14: #{residual_add_linear.1} parent=11 // pred_check_branch
          %121 = sbr.rel (%p119) target = $region16
        $region15: #{residual_add_linear.1} parent=11 // pred_region
          %s123 = ssub.s32 1024, 1024
          %124 = vsyncadd [#allocation3], %s123
          %s125 = sshll.u32 [#allocation2], 4
          %s126 = int_to_ptr.vmem [resolvable:$true] %s125
          %131 = dma.hbm_to_vmem [thread:$0]  %s1, 1024, %s126, [#allocation3], 64, 64, 4
        $region16: #{residual_add_linear.1} parent=11 // pred_fallthru
          _
        // Predicated region
        $region17: #{residual_add_linear.1} parent=11 // pred_check
          %p132 = pneg %p78
        $region18: #{residual_add_linear.1} parent=11 // pred_check_branch
          %134 = sbr.rel (%p132) target = $region20
        $region19: #{residual_add_linear.1} parent=11 // pred_region
          _
        $region20: #{residual_add_linear.1} parent=11 // pred_fallthru
          _
      $region12: #{residual_add_linear.1} parent=5 // pred_fallthru
        _
      %p135 = scmp.lt.s32.totalorder %s10, 2
      // Predicated region
      $region21: #{residual_add_linear.1} parent=5 // pred_check
        %p136 = pneg %p135
      $region22: #{residual_add_linear.1} parent=5 // pred_check_branch
        %138 = sbr.rel (%p136) target = $region24
      $region23: #{residual_add_linear.1} parent=5 // pred_region
        // Predicated region
        $region25: #{residual_add_linear.1} parent=23 // pred_check
          %p139 = pneg %p30
        $region26: #{residual_add_linear.1} parent=23 // pred_check_branch
          %141 = sbr.rel (%p139) target = $region28
        $region27: #{residual_add_linear.1} parent=23 // pred_region
          %p142 = scmp.lt.s32.totalorder %s10, 1
          %s143 = scalar_select %p142, %s10, 1
          %s144 = smul.addr %s143, 8
          %s145 = scalar_lea.vmem %s0, %s144
        $region28: #{residual_add_linear.1} parent=23 // pred_fallthru
          _
      $region24: #{residual_add_linear.1} parent=5 // pred_fallthru
        _
      %p146 = scmp.le.s32.totalorder 1, %s10
      %p147 = scmp.lt.s32.totalorder %s10, 3
      %p148 = pnand %p146, %p147
      %p149 = pneg %p148
      // Predicated region
      $region29: #{residual_add_linear.1} parent=5 // pred_check
        _
      $region30: #{residual_add_linear.1} parent=5 // pred_check_branch
        %151 = sbr.rel (%p148) target = $region32
      $region31: #{residual_add_linear.1} parent=5 // pred_region
        %s152 = ssub.s32 %s10, 1
        // Predicated region
        $region33: #{residual_add_linear.1} parent=31 // pred_check
          %p153 = pneg %p57
        $region34: #{residual_add_linear.1} parent=31 // pred_check_branch
          %155 = sbr.rel (%p153) target = $region36
        $region35: #{residual_add_linear.1} parent=31 // pred_region
          %156 = dma.done [#allocation3], 1024
        $region36: #{residual_add_linear.1} parent=31 // pred_fallthru
          _
        %p157 = scmp.lt.s32.totalorder %s15, 1
        %s158 = scalar_select %p157, %s15, 1
        %s159 = smul.addr %s158, 8
        %s160 = scalar_lea.vmem %s0, %s159
        %p161 = pneg %p36
        %p162 = pneg %p33
        %p163 = pneg %p57
        %p164 = pneg %p54
        %p165 = pneg %p78
        %p166 = pneg %p75
        %p167 = pneg %p104
        %p168 = pneg %p101
        %p169 = scmp.lt.s32.totalorder %s15, 1
        %s170 = scalar_select %p169, %s15, 1
        %s171 = smul.addr %s170, 8
        %s172 = scalar_lea.vmem %s3, %s171
        %p173 = scmp.lt.s32.totalorder %s15, 1
        %s174 = scalar_select %p173, %s15, 1
        %s175 = smul.addr %s174, 8
        %s176 = scalar_lea.vmem %s0, %s175
        %p177 = scmp.lt.s32.totalorder %s15, 1
        %s178 = scalar_select %p177, %s15, 1
        %s179 = smul.addr %s178, 8
        %s180 = scalar_lea.vmem %s3, %s179
        %v182 = vld [vmem:[%s176] sm:$0xff]
        %v183 = vpack.c.bf16 %v182, %v182
        %v184 = vld [vmem:[#allocation2] sm:$0xf]
        %v185 = vld [vmem:[#allocation2 + $0x4] sm:$0xf]
        %v186 = vld [vmem:[#allocation2 + $0x8] sm:$0xf]
        %v187 = vld [vmem:[#allocation2 + $0xc] sm:$0xf]
        %v188 = vld [vmem:[#allocation2 + $0x10] sm:$0xf]
        %v189 = vld [vmem:[#allocation2 + $0x14] sm:$0xf]
        %v190 = vld [vmem:[#allocation2 + $0x18] sm:$0xf]
        %v191 = vld [vmem:[#allocation2 + $0x1c] sm:$0xf]
        %v192 = vld [vmem:[#allocation2 + $0x20] sm:$0xf]
        %v193 = vld [vmem:[#allocation2 + $0x24] sm:$0xf]
        %v194 = vld [vmem:[#allocation2 + $0x28] sm:$0xf]
        %v195 = vld [vmem:[#allocation2 + $0x2c] sm:$0xf]
        %v196 = vld [vmem:[#allocation2 + $0x30] sm:$0xf]
        %v197 = vld [vmem:[#allocation2 + $0x34] sm:$0xf]
        %v198 = vld [vmem:[#allocation2 + $0x38] sm:$0xf]
        %v199 = vld [vmem:[#allocation2 + $0x3c] sm:$0xf]
        %v200 = vld [vmem:[%s2] sm:$0x1]
        %v202 = vlaneseq
        %v203 = vshrl.u32 %v202, 7
        %v204 = vsub.s32 0, %v203
        %v205 = vrot.slane %v200, %v204
        %v223 = vunpack.c.l.b16 %v184
        %v224 = vunpack.c.l.b16 %v185
        %v225 = vunpack.c.l.b16 %v186
        %v226 = vunpack.c.l.b16 %v187
        %v227 = vunpack.c.l.b16 %v188
        %v228 = vunpack.c.l.b16 %v189
        %v229 = vunpack.c.l.b16 %v190
        %v230 = vunpack.c.l.b16 %v191
        %v231 = vunpack.c.l.b16 %v192
        %v232 = vunpack.c.l.b16 %v193
        %v233 = vunpack.c.l.b16 %v194
        %v234 = vunpack.c.l.b16 %v195
        %v235 = vunpack.c.l.b16 %v196
        %v236 = vunpack.c.l.b16 %v197
        %v237 = vunpack.c.l.b16 %v198
        %v238 = vunpack.c.l.b16 %v199
        %v239 = vpack.c.b16 %v224, %v223
        %v240 = vpack.c.b16 %v226, %v225
        %v241 = vpack.c.b16 %v228, %v227
        %v242 = vpack.c.b16 %v230, %v229
        %v243 = vpack.c.b16 %v232, %v231
        %v244 = vpack.c.b16 %v234, %v233
        %v245 = vpack.c.b16 %v236, %v235
        %v246 = vpack.c.b16 %v238, %v237
        %255 = vmatprep.subr.bf16.mxu0 0
        %256 = vmatpush1.bf16.msra.mxu0 %v239
        %257 = vmatprep.subr.bf16.mxu0 0
        %258 = vmatpush1.bf16.msra.mxu0 %v240
        %259 = vmatprep.subr.bf16.mxu0 0
        %260 = vmatpush1.bf16.msra.mxu0 %v241
        %261 = vmatprep.subr.bf16.mxu0 0
        %262 = vmatpush1.bf16.msra.mxu0 %v242
        %263 = vmatprep.subr.bf16.mxu0 0
        %264 = vmatpush1.bf16.msra.mxu0 %v243
        %265 = vmatprep.subr.bf16.mxu0 0
        %266 = vmatpush1.bf16.msra.mxu0 %v244
        %267 = vmatprep.subr.bf16.mxu0 0
        %268 = vmatpush1.bf16.msra.mxu0 %v245
        %269 = vmatprep.subr.bf16.mxu0 0
        %270 = vmatpush1.bf16.msra.mxu0 %v246
        %271 = vmatprep.subr.bf16.mxu0 0
        %272 = vmatpush1.bf16.msra.mxu0 0
        %273 = vmatprep.subr.bf16.mxu0 0
        %274 = vmatpush1.bf16.msra.mxu0 0
        %275 = vmatprep.subr.bf16.mxu0 0
        %276 = vmatpush1.bf16.msra.mxu0 0
        %277 = vmatprep.subr.bf16.mxu0 0
        %278 = vmatpush1.bf16.msra.mxu0 0
        %279 = vmatprep.subr.bf16.mxu0 0
        %280 = vmatpush1.bf16.msra.mxu0 0
        %281 = vmatprep.subr.bf16.mxu0 0
        %282 = vmatpush1.bf16.msra.mxu0 0
        %283 = vmatprep.subr.bf16.mxu0 0
        %284 = vmatpush1.bf16.msra.mxu0 0
        %285 = vmatprep.subr.bf16.mxu0 0
        %286 = vmatpush1.bf16.msra.mxu0 0
        %287 = vmatprep.mubr.bf16.mxu0 0
        %288 = vmatmul.mubr.bf16.gmra.mrb[0].mxu0 %v183
        %v289 = vpop.f32.mrb[0].mxu0
        %v290 = vadd.f32 %v205, %v289
        %v291 = vpop.f32.mrb[0].mxu0
        %v292 = vpop.f32.mrb[0].mxu0
        %v293 = vpop.f32.mrb[0].mxu0
        %294 = vdwg.mxu0
        %v295 = vadd.f32 %v290, %v182
        %296 = vst [vmem:[%s180] sm:$0xff] %v295
        %p297 = scmp.lt.s32.totalorder %s15, 1
        %s298 = scalar_select %p297, %s15, 1
        %s299 = smul.addr %s298, 8
        %s300 = scalar_lea.vmem %s3, %s299
        // Predicated region
        $region37: #{residual_add_linear.1} parent=31 // pred_check
          %p301 = pneg %p101
        $region38: #{residual_add_linear.1} parent=31 // pred_check_branch
          %303 = sbr.rel (%p301) target = $region40
        $region39: #{residual_add_linear.1} parent=31 // pred_region
          _
        $region40: #{residual_add_linear.1} parent=31 // pred_fallthru
          _
      $region32: #{residual_add_linear.1} parent=5 // pred_fallthru
        _
      %p304 = scmp.le.s32.totalorder 2, %s10
      // Predicated region
      $region41: #{residual_add_linear.1} parent=5 // pred_check
        %p305 = pneg %p304
      $region42: #{residual_add_linear.1} parent=5 // pred_check_branch
        %307 = sbr.rel (%p305) target = $region44
      $region43: #{residual_add_linear.1} parent=5 // pred_region
        %s308 = ssub.s32 %s10, 2
        // Predicated region
        $region45: #{residual_add_linear.1} parent=43 // pred_check
          %p309 = pneg %p107
        $region46: #{residual_add_linear.1} parent=43 // pred_check_branch
          %311 = sbr.rel (%p309) target = $region48
        $region47: #{residual_add_linear.1} parent=43 // pred_region
          %p312 = scmp.lt.s32.totalorder %s16, 1
          %s313 = scalar_select %p312, %s16, 1
          %s314 = smul.addr %s313, 8
          %s315 = scalar_lea.vmem %s3, %s314
        $region48: #{residual_add_linear.1} parent=43 // pred_fallthru
          _
      $region44: #{residual_add_linear.1} parent=5 // pred_fallthru
        _
    $region6: #{residual_add_linear.1} parent=1 // loop_footer
      %s14 = sadd.s32 1, %s10
    $region7: #{residual_add_linear.1} parent=1 // loop_footer_branch
      %9 = sbr.rel target = $region3
    $region8: #{residual_add_linear.1} parent=1 // loop_exit
      _
    %316 = vsyncpa [#allocation3], 1
    %s317 = scalar_lea.sflag [#allocation3], 1
    %318 = vsyncpa %s317, 1

</llo_original>
